<compile_context>
chip_gen: v7x
topology: tpu7x:2x2x1
jax: 0.10.0
libtpu: 0.0.40
codegen_flags: <defaults>
</compile_context>

<pallas_src>
import functools

import jax
import jax.numpy as jnp
from jax.experimental import pallas as pl
from jax.experimental.pallas import tpu as pltpu

_EPS = 1e-6  # matches torch.nn.functional.pairwise_distance default eps


def _contrastive_kernel(x1_ref, x2_ref, y_ref, out_ref, acc_ref, *,
                        margin, batch, block_rows, tiles_per_core, needs_mask):
    j = pl.program_id(1)  # batch-tile (reduction) axis within this core

    @pl.when(j == 0)
    def _init():
        acc_ref[...] = jnp.zeros_like(acc_ref)

    # Cast to f32 inside the kernel (inputs stream in native dtype).
    diff = (x1_ref[...].astype(jnp.float32)
            - x2_ref[...].astype(jnp.float32) + _EPS)
    d2 = jnp.sum(diff * diff, axis=-1, keepdims=True)        # [TB, 1] squared L2
    d = jnp.sqrt(d2)                                          # euclidean distance
    y = y_ref[...].astype(jnp.float32)                        # [TB, 1]
    hinge = jnp.maximum(margin - d, 0.0)
    # Use d2 directly for the dissimilar term (skips the sqrt->square round-trip).
    per_row = (1.0 - y) * d2 + y * (hinge * hinge)            # [TB, 1]

    if needs_mask:
        # Global (un-clamped) tile index -> global row; zero stale tail rows of
        # the ragged boundary block and any duplicated clamped tile.
        tile = pl.program_id(0) * tiles_per_core + j
        row = (jax.lax.broadcasted_iota(jnp.int32, per_row.shape, 0)
               + tile * block_rows)
        per_row = jnp.where(row < batch, per_row, 0.0)

    # Vector accumulator: no per-step cross-sublane reduce / scalar RMW chain.
    acc_ref[...] += per_row

    @pl.when(j == pl.num_programs(1) - 1)
    def _finalize():
        out_ref[...] = (jnp.sum(acc_ref[...], axis=(0, 1), keepdims=True)
                        * (1.0 / batch))


def _vmem_capacity_bytes():
    try:
        return int(pltpu.get_tpu_info().vmem_capacity_bytes)
    except Exception:
        return 64 * 1024 * 1024  # conservative (v7x physical VMEM)


def contrastive_loss(x1, x2, y, margin=2.0, block_rows=None,
                     vmem_limit_bytes=None):
    """Pallas TPU implementation of ContrastiveLoss.forward."""
    B, D = x1.shape
    assert x2.shape == (B, D)
    # y is tiny (B*4 bytes); cast/shape it host-side to keep tiling rules simple.
    y2 = jnp.asarray(y, jnp.float32).reshape(B, 1)

    itemsize = jnp.dtype(x1.dtype).itemsize
    # Minimum sublane multiple for the streamed dtype (f32: 8, bf16: 16, i8: 32).
    sub = {4: 8, 2: 16, 1: 32}.get(itemsize, 8)

    capacity = _vmem_capacity_bytes()
    # Working-set budget: ~half of v7x's 64 MiB, quarter of v5e/v6e's 128 MiB.
    budget = min(32 * 1024 * 1024, capacity // 2)
    # Per-input-buffer slab target: bigger on 128 MiB-VMEM chips (v5e/v6e),
    # ~4 MiB on v7x. Amortizes the ~0.35 us per-grid-step overhead.
    slab_target = (8 * 1024 * 1024 if capacity >= 96 * 1024 * 1024
                   else 4 * 1024 * 1024)

    if block_rows is None:
        tb = slab_target // (D * itemsize)
        # Keep 2 inputs x 2 pipeline buffers (+ y + acc) within the budget.
        tb = min(tb, budget // (4 * D * itemsize + 3 * 4))
        tb = max(sub, (tb // sub) * sub)
    else:
        tb = max(sub, (int(block_rows) // sub) * sub)

    if tb >= B:
        tb = B  # single full-extent block (always a legal block shape)

    num_tiles = -(-B // tb)                    # cdiv
    # Leading "parallel" axis -> both TensorCores on v7x; serial no-op on 1-TC.
    num_cores = 2 if num_tiles >= 2 else 1
    tiles_per_core = -(-num_tiles // num_cores)
    # Mask is compiled out entirely when the core x tile grid exactly covers B.
    needs_mask = (num_cores * tiles_per_core * tb != B)

    if vmem_limit_bytes is None:
        footprint = (4 * tb * D * itemsize   # 2 inputs x 2 pipeline buffers
                     + 4 * tb * 4            # y (double-buffered, f32)
                     + tb * 4 + 4096)        # acc scratch + output + slack
        vmem_limit_bytes = max(16 * 1024 * 1024, footprint + 8 * 1024 * 1024)
        vmem_limit_bytes = min(vmem_limit_bytes, (capacity * 3) // 4)

    last_tile = num_tiles - 1

    def _in_map(c, j):
        # Clamp to the last valid tile; a duplicated tile (odd tile count split
        # across 2 cores) is fully zeroed by the in-kernel global-row mask.
        return (jnp.minimum(c * tiles_per_core + j, last_tile), 0)

    cost = pl.CostEstimate(
        flops=4 * B * D + 10 * B,
        transcendentals=B,
        bytes_accessed=2 * B * D * itemsize + B * 4 + num_cores * 4,
    )

    out = pl.pallas_call(
        functools.partial(_contrastive_kernel, margin=float(margin), batch=B,
                          block_rows=tb, tiles_per_core=tiles_per_core,
                          needs_mask=needs_mask),
        out_shape=jax.ShapeDtypeStruct((num_cores, 1), jnp.float32),
        grid_spec=pltpu.PrefetchScalarGridSpec(
            num_scalar_prefetch=0,
            grid=(num_cores, tiles_per_core),
            in_specs=[
                pl.BlockSpec((tb, D), _in_map),
                pl.BlockSpec((tb, D), _in_map),
                pl.BlockSpec((tb, 1), _in_map),
            ],
            # One resident partial-sum block per core, written once at finalize.
            out_specs=pl.BlockSpec((1, 1), lambda c, j: (c, 0)),
            scratch_shapes=[pltpu.VMEM((tb, 1), jnp.float32)],
        ),
        compiler_params=pltpu.CompilerParams(
            dimension_semantics=("parallel", "arbitrary"),
            vmem_limit_bytes=int(vmem_limit_bytes),
        ),
        cost_estimate=cost,
    )(x1, x2, y2)

    # Sum the per-core partial means (each already scaled by 1/B).
    return jnp.sum(out)


def _reference(x1, x2, y, margin=2.0):
    # Pure-JAX reference mirroring the PyTorch module.
    d = jnp.sqrt(jnp.sum(jnp.square(
        x1.astype(jnp.float32) - x2.astype(jnp.float32) + _EPS), axis=-1))
    y = y.astype(jnp.float32)
    return jnp.mean((1.0 - y) * d ** 2
                    + y * jnp.maximum(margin - d, 0.0) ** 2)


if __name__ == "__main__":
    key = jax.random.PRNGKey(0)
    k1, k2, k3, k4, k5, k6 = jax.random.split(key, 6)

    # 1) Small siamese-embedding shapes -> single-block path (1 core, 1 tile).
    B, D = 8, 32
    x1 = jax.random.normal(k1, (B, D), dtype=jnp.float32)
    x2 = jax.random.normal(k2, (B, D), dtype=jnp.float32)
    y = jax.random.bernoulli(k3, 0.5, (B,)).astype(jnp.float32)

    loss = jax.block_until_ready(contrastive_loss(x1, x2, y, margin=2.0))
    ref = jax.block_until_ready(_reference(x1, x2, y, margin=2.0))
    assert jnp.allclose(loss, ref, rtol=1e-5, atol=1e-5), (loss, ref)

    # 2) Tiled path: bf16 native-dtype streaming, B not a multiple of the tile
    #    (ragged boundary block + row mask, no host-side padding), dual-core
    #    "parallel" split with per-core partials, f32 accumulation.
    B2, D2 = 40, 256
    a1 = jax.random.normal(k4, (B2, D2), dtype=jnp.bfloat16)
    a2 = jax.random.normal(k5, (B2, D2), dtype=jnp.bfloat16)
    yb = jax.random.bernoulli(k6, 0.5, (B2,)).astype(jnp.float32)

    loss2 = jax.block_until_ready(
        contrastive_loss(a1, a2, yb, margin=2.0, block_rows=16))
    ref2 = jax.block_until_ready(_reference(a1, a2, yb, margin=2.0))
    assert jnp.allclose(loss2, ref2, rtol=1e-4, atol=1e-4), (loss2, ref2)

    print("KERNEL_OK")
</pallas_src>

<mosaic_0001>
module attributes {stable_mosaic.version = 11 : i64} {
  func.func @_contrastive_kernel(%arg0: i32, %arg1: i32, %arg2: memref<8x32xf32, #tpu.memory_space<vmem>>, %arg3: memref<8x32xf32, #tpu.memory_space<vmem>>, %arg4: memref<8x1xf32, #tpu.memory_space<vmem>>, %arg5: memref<1x1xf32, #tpu.memory_space<vmem>>, %arg6: memref<8x1xf32, #tpu.memory_space<vmem>>) attributes {dimension_semantics = [#tpu.dimension_semantics<parallel>, #tpu.dimension_semantics<arbitrary>], iteration_bounds = array<i64: 1, 1>, scalar_prefetch = 0 : i64, scratch_operands = 1 : i64, tpu.core_type = #tpu.core_type<tc>, window_params = [{transform_indices = @transform_0, window_bounds = array<i64: 8, 32>}, {transform_indices = @transform_1, window_bounds = array<i64: 8, 32>}, {transform_indices = @transform_2, window_bounds = array<i64: 8, 1>}, {transform_indices = @transform_3, window_bounds = array<i64: 1, 1>}]} {
    %c0_i32 = arith.constant 0 : i32
    %0 = arith.cmpi eq, %arg1, %c0_i32 : i32
    %1 = arith.extui %0 : i1 to i32
    %c0_i32_0 = arith.constant 0 : i32
    %2 = arith.cmpi ne, %1, %c0_i32_0 : i32
    scf.if %2 {
      %cst_16 = arith.constant 0.000000e+00 : f32
      %29 = vector.broadcast %cst_16 : f32 to vector<8x1xf32>
      %c0_17 = arith.constant 0 : index
      %c0_18 = arith.constant 0 : index
      %30 = vector.load %arg6[%c0_17, %c0_18] : memref<8x1xf32, #tpu.memory_space<vmem>>, vector<8x1xf32>
      tpu.vector_store %arg6[%c0_17, %c0_18], %29 {strides = array<i32>} : memref<8x1xf32, #tpu.memory_space<vmem>>, vector<8x1xf32>,
    } else {
    }
    %c0 = arith.constant 0 : index
    %c0_1 = arith.constant 0 : index
    %3 = vector.load %arg2[%c0, %c0_1] : memref<8x32xf32, #tpu.memory_space<vmem>>, vector<8x32xf32>
    %c0_2 = arith.constant 0 : index
    %c0_3 = arith.constant 0 : index
    %4 = vector.load %arg3[%c0_2, %c0_3] : memref<8x32xf32, #tpu.memory_space<vmem>>, vector<8x32xf32>
    %5 = arith.subf %3, %4 : vector<8x32xf32>
    %cst = arith.constant 9.99999997E-7 : f32
    %6 = vector.broadcast %cst : f32 to vector<8x32xf32>
    %7 = arith.addf %5, %6 : vector<8x32xf32>
    %8 = arith.mulf %7, %7 : vector<8x32xf32>
    %cst_4 = arith.constant dense<0.000000e+00> : vector<8xf32>
    %9 = vector.multi_reduction <add>, %8, %cst_4 [1] : vector<8x32xf32> to vector<8xf32>
    %10 = vector.shape_cast %9 : vector<8xf32> to vector<8x1xf32>
    %11 = math.sqrt %10 : vector<8x1xf32>
    %c0_5 = arith.constant 0 : index
    %c0_6 = arith.constant 0 : index
    %12 = vector.load %arg4[%c0_5, %c0_6] : memref<8x1xf32, #tpu.memory_space<vmem>>, vector<8x1xf32>
    %cst_7 = arith.constant 2.000000e+00 : f32
    %13 = vector.broadcast %cst_7 : f32 to vector<8x1xf32>
    %14 = arith.subf %13, %11 : vector<8x1xf32>
    %cst_8 = arith.constant 0.000000e+00 : f32
    %15 = vector.broadcast %cst_8 : f32 to vector<8x1xf32>
    %16 = arith.maximumf %14, %15 : vector<8x1xf32>
    %cst_9 = arith.constant 1.000000e+00 : f32
    %17 = vector.broadcast %cst_9 : f32 to vector<8x1xf32>
    %18 = arith.subf %17, %12 : vector<8x1xf32>
    %19 = arith.mulf %18, %10 : vector<8x1xf32>
    %20 = arith.mulf %16, %16 : vector<8x1xf32>
    %21 = arith.mulf %12, %20 : vector<8x1xf32>
    %22 = arith.addf %19, %21 : vector<8x1xf32>
    %c0_10 = arith.constant 0 : index
    %c0_11 = arith.constant 0 : index
    %23 = vector.load %arg6[%c0_10, %c0_11] : memref<8x1xf32, #tpu.memory_space<vmem>>, vector<8x1xf32>
    %24 = arith.addf %23, %22 : vector<8x1xf32>
    %c0_12 = arith.constant 0 : index
    %c0_13 = arith.constant 0 : index
    %25 = vector.load %arg6[%c0_12, %c0_13] : memref<8x1xf32, #tpu.memory_space<vmem>>, vector<8x1xf32>
    tpu.vector_store %arg6[%c0_12, %c0_13], %24 {strides = array<i32>} : memref<8x1xf32, #tpu.memory_space<vmem>>, vector<8x1xf32>,
    %c0_i32_14 = arith.constant 0 : i32
    %26 = arith.cmpi eq, %arg1, %c0_i32_14 : i32
    %27 = arith.extui %26 : i1 to i32
    %c0_i32_15 = arith.constant 0 : i32
    %28 = arith.cmpi ne, %27, %c0_i32_15 : i32
    scf.if %28 {
      %c0_16 = arith.constant 0 : index
      %c0_17 = arith.constant 0 : index
      %29 = vector.load %arg6[%c0_16, %c0_17] : memref<8x1xf32, #tpu.memory_space<vmem>>, vector<8x1xf32>
      %30 = vector.shape_cast %29 : vector<8x1xf32> to vector<1x8x1xf32>
      %cst_18 = arith.constant dense<0.000000e+00> : vector<1xf32>
      %31 = vector.multi_reduction <add>, %30, %cst_18 [1, 2] : vector<1x8x1xf32> to vector<1xf32>
      %32 = vector.shape_cast %31 : vector<1xf32> to vector<1x1x1xf32>
      %33 = vector.extract %32[0, 0, 0] : f32 from vector<1x1x1xf32>
      %34 = vector.broadcast %33 : f32 to vector<1x1xf32>
      %cst_19 = arith.constant 1.250000e-01 : f32
      %35 = vector.broadcast %cst_19 : f32 to vector<1x1xf32>
      %36 = arith.mulf %34, %35 : vector<1x1xf32>
      %c0_20 = arith.constant 0 : index
      %c0_21 = arith.constant 0 : index
      %37 = vector.load %arg5[%c0_20, %c0_21] : memref<1x1xf32, #tpu.memory_space<vmem>>, vector<1x1xf32>
      tpu.vector_store %arg5[%c0_20, %c0_21], %36 {strides = array<i32>} : memref<1x1xf32, #tpu.memory_space<vmem>>, vector<1x1xf32>,
    } else {
    }
    return
  }
  func.func @transform_0(%arg0: i32, %arg1: i32) -> (i32, i32) {
    %c1_i32 = arith.constant 1 : i32
    %0 = arith.muli %arg0, %c1_i32 : i32
    %1 = arith.addi %0, %arg1 : i32
    %c0_i32 = arith.constant 0 : i32
    %2 = arith.minsi %1, %c0_i32 : i32
    %c0_i32_0 = arith.constant 0 : i32
    %c0_i32_1 = arith.constant 0 : i32
    return %2, %c0_i32_0 : i32, i32
  }
  func.func @transform_1(%arg0: i32, %arg1: i32) -> (i32, i32) {
    %c1_i32 = arith.constant 1 : i32
    %0 = arith.muli %arg0, %c1_i32 : i32
    %1 = arith.addi %0, %arg1 : i32
    %c0_i32 = arith.constant 0 : i32
    %2 = arith.minsi %1, %c0_i32 : i32
    %c0_i32_0 = arith.constant 0 : i32
    %c0_i32_1 = arith.constant 0 : i32
    return %2, %c0_i32_0 : i32, i32
  }
  func.func @transform_2(%arg0: i32, %arg1: i32) -> (i32, i32) {
    %c1_i32 = arith.constant 1 : i32
    %0 = arith.muli %arg0, %c1_i32 : i32
    %1 = arith.addi %0, %arg1 : i32
    %c0_i32 = arith.constant 0 : i32
    %2 = arith.minsi %1, %c0_i32 : i32
    %c0_i32_0 = arith.constant 0 : i32
    %c0_i32_1 = arith.constant 0 : i32
    return %2, %c0_i32_0 : i32, i32
  }
  func.func @transform_3(%arg0: i32, %arg1: i32) -> (i32, i32) {
    %c0_i32 = arith.constant 0 : i32
    %c0_i32_0 = arith.constant 0 : i32
    return %arg0, %c0_i32 : i32, i32
  }
}

</mosaic_0001>

<llo_original>
// kernel: tpu_custom_call.1
$region0: #{tpu_custom_call.1}
  #allocation0 [shape = 'u32[]', space=smem, size = 0x4, offset = 0x4, fixed_abs, tag = 'smem constant byte address 0x4 - core index']
  #allocation1 [shape = 'u32[144,128]{1,0:T(1,128)}', space=vmem, size = 0x12000, scoped, tag = 'internal scratch']
  #allocation2 [shape = 'f32[8,1]{1,0:T(8,128)}', space=vmem, size = 0x1000, scoped, tag = 'scratch operand']
  %s0 = inlined_call_operand.vmem [shape: f32[8,32], index: 0, kind: input, shape index: {}]
  %s1 = inlined_call_operand.hbm [shape: f32[8,32], index: 1, kind: input, shape index: {}]
  %s2 = inlined_call_operand.vmem [shape: f32[8,1], index: 2, kind: input, shape index: {}]
  %s3 = inlined_call_operand.hbm [shape: f32[1,1], index: 3, kind: output, shape index: {}]
  %s4 = sld [smem:[#allocation0]]
  $region34: #{tpu_custom_call.1} parent=0
    _
  %s6 = ssub.s32 1, %s4
  %s7 = scalar_select 0, %s6, %s4
  $region1: #{tpu_custom_call.1} parent=0
    #allocation3 [shape = 'u8[4096]{0}', space=vmem, size = 0x1000, scoped, tag = 'input window, operand 1, single buffered']
    #allocation4 [shape = 's32[1]{0}', space=sflag, size = 0x4, scoped, tag = 'scoped memory for tpu_custom_call.1']
    #allocation5 [shape = 's32[1]{0}', space=sflag, size = 0x4, scoped, tag = 'scoped memory for tpu_custom_call.1']
    #allocation6 [shape = 'u8[512]{0}', space=vmem, size = 0x400, scoped, tag = 'output window, operand 0, single buffered']
    %8 = vsyncpa [#allocation4], 0
    %9 = vsyncpa [#allocation5], 0
    // Predicated region
    $region2: #{tpu_custom_call.1} parent=1 // pred_check
      _
    $region3: #{tpu_custom_call.1} parent=1 // pred_check_branch
      %11 = sbr.rel (0) target = $region5
    $region4: #{tpu_custom_call.1} parent=1 // pred_region
      %s12 = sadd.s32 0, 0
      %p13 = scmp.lt.s32.totalorder %s12, 0
      %s14 = scalar_select %p13, %s12, 0
      %p15 = scmp.lt.s32.totalorder %s14, 0
      %s16 = scalar_select %p15, %s14, 0
      %s17 = smul.addr %s16, 8
      %s18 = scalar_lea.vmem %s0, %s17
      %s19 = sadd.s32 0, 0
      %p20 = scmp.lt.s32.totalorder %s19, 0
      %s21 = scalar_select %p20, %s19, 0
    $region5: #{tpu_custom_call.1} parent=1 // pred_fallthru
      _
    // Predicated region
    $region6: #{tpu_custom_call.1} parent=1 // pred_check
      _
    $region7: #{tpu_custom_call.1} parent=1 // pred_check_branch
      %23 = sbr.rel (0) target = $region9
    $region8: #{tpu_custom_call.1} parent=1 // pred_region
      %s24 = sadd.s32 0, 0
      %p25 = scmp.lt.s32.totalorder %s24, 0
      %s26 = scalar_select %p25, %s24, 0
      %s28 = ssub.s32 128, 128
      %29 = vsyncadd [#allocation4], %s28
      %s30 = smul.addr %s26, 128
      %s31 = scalar_lea.hbm %s1, %s30
      %s33 = sshll.u32 [#allocation3], 4
      %s34 = int_to_ptr.vmem [resolvable:$true] %s33
      %36 = dma.hbm_to_vmem [thread:$0]  %s31, 128, %s34, [#allocation4]
    $region9: #{tpu_custom_call.1} parent=1 // pred_fallthru
      _
    // Predicated region
    $region10: #{tpu_custom_call.1} parent=1 // pred_check
      _
    $region11: #{tpu_custom_call.1} parent=1 // pred_check_branch
      %38 = sbr.rel (0) target = $region13
    $region12: #{tpu_custom_call.1} parent=1 // pred_region
      %s39 = sadd.s32 0, 0
      %p40 = scmp.lt.s32.totalorder %s39, 0
      %s41 = scalar_select %p40, %s39, 0
      %p42 = scmp.lt.s32.totalorder %s41, 0
      %s43 = scalar_select %p42, %s41, 0
      %s44 = smul.addr %s43, 8
      %s45 = scalar_lea.vmem %s2, %s44
      %s46 = sadd.s32 0, 0
      %p47 = scmp.lt.s32.totalorder %s46, 0
      %s48 = scalar_select %p47, %s46, 0
    $region13: #{tpu_custom_call.1} parent=1 // pred_fallthru
      _
    // Predicated region
    $region14: #{tpu_custom_call.1} parent=1 // pred_check
      _
    $region15: #{tpu_custom_call.1} parent=1 // pred_check_branch
      %50 = sbr.rel (0) target = $region17
    $region16: #{tpu_custom_call.1} parent=1 // pred_region
      %51 = dma.done [#allocation4], 128
    $region17: #{tpu_custom_call.1} parent=1 // pred_fallthru
      _
    %s52 = sadd.s32 0, 0
    %p53 = scmp.lt.s32.totalorder %s52, 0
    %s54 = scalar_select %p53, %s52, 0
    %p55 = scmp.lt.s32.totalorder %s54, 0
    %s56 = scalar_select %p55, %s54, 0
    %s57 = smul.addr %s56, 8
    %s58 = scalar_lea.vmem %s0, %s57
    %s59 = sadd.s32 0, 0
    %p60 = scmp.lt.s32.totalorder %s59, 0
    %s61 = scalar_select %p60, %s59, 0
    %p62 = scmp.lt.s32.totalorder %s61, 0
    %s63 = scalar_select %p62, %s61, 0
    %s64 = smul.addr %s63, 8
    %s65 = scalar_lea.vmem %s2, %s64
    %s66 = sadd.s32 0, 0
    %p67 = scmp.lt.s32.totalorder %s66, 0
    %s68 = scalar_select %p67, %s66, 0
    %p69 = scmp.lt.s32.totalorder %s68, 0
    %s70 = scalar_select %p69, %s68, 0
    %s71 = smul.addr %s70, 8
    %s72 = scalar_lea.vmem %s0, %s71
    %s73 = sadd.s32 0, 0
    %p74 = scmp.lt.s32.totalorder %s73, 0
    %s75 = scalar_select %p74, %s73, 0
    %s76 = sadd.s32 0, 0
    %p77 = scmp.lt.s32.totalorder %s76, 0
    %s78 = scalar_select %p77, %s76, 0
    %s79 = sadd.s32 0, 0
    %p80 = scmp.lt.s32.totalorder %s79, 0
    %s81 = scalar_select %p80, %s79, 0
    %p82 = scmp.lt.s32.totalorder %s81, 0
    %s83 = scalar_select %p82, %s81, 0
    %s84 = smul.addr %s83, 8
    %s85 = scalar_lea.vmem %s2, %s84
    %s86 = sadd.s32 0, 0
    %p87 = scmp.lt.s32.totalorder %s86, 0
    %s88 = scalar_select %p87, %s86, 0
    %p89 = scmp.eq.s32.totalorder 0, 0
    // Predicated region
    $region18: #{tpu_custom_call.1} parent=1 // pred_check
      %p90 = pneg %p89
    $region19: #{tpu_custom_call.1} parent=1 // pred_check_branch
      %92 = sbr.rel (%p90) target = $region21
    $region20: #{tpu_custom_call.1} parent=1 // pred_region
      %vm93 = vcmask 7168
      %94 = vst.msk [vmem:[#allocation2] sm:$0xff] %vm93, 0.0
    $region21: #{tpu_custom_call.1} parent=1 // pred_fallthru
      _
    %v95 = vld [vmem:[%s72] sm:$0xff]
    %v96 = vld [vmem:[#allocation3] sm:$0xff]
    %v97 = vsub.f32 %v95, %v96
    %v98 = vadd.f32 %v97, 1e-06
    %v99 = vmul.f32 %v98, %v98
    %vm100 = vcmask 261120
    %v101 = vsel %vm100, %v99, 0.0
    %102 = vadd.xlane.f32.xlu0 %v101
    %v103 = vpop.xlane.xlu0 %102
    %v104 = vrsqrt.pop %v103
    %v105 = vmul.f32 %v103, %v104
    %vm106 = vcmp.eq.f32.partialorder %v103, inf
    %v107 = vsel %vm106, %v103, %v105
    %vm108 = vcmp.eq.f32.partialorder %v103, 0.0
    %v109 = vand.u32 %v103, 2147483648
    %v110 = vsel %vm108, %v109, %v107
    %v111 = vld [vmem:[%s85] sm:$0xff]
    %v112 = vsub.f32 2.0, %v110
    %v113 = vmax.f32 %v112, 0.0
    %v114 = vsub.f32 1.0, %v111
    %v115 = vmul.f32 %v114, %v103
    %v116 = vmul.f32 %v113, %v113
    %v117 = vmul.f32 %v111, %v116
    %v118 = vadd.f32 %v115, %v117
    %v119 = vld [vmem:[#allocation2] sm:$0xff]
    %v120 = vadd.f32 %v119, %v118
    %vm121 = vcmask 7168
    %122 = vst.msk [vmem:[#allocation2] sm:$0xff] %vm121, %v120
    // Predicated region
    $region22: #{tpu_custom_call.1} parent=1 // pred_check
      %p123 = pneg %p89
    $region23: #{tpu_custom_call.1} parent=1 // pred_check_branch
      %125 = sbr.rel (%p123) target = $region25
    $region24: #{tpu_custom_call.1} parent=1 // pred_region
      %v126 = vld [vmem:[#allocation2] sm:$0xff]
      %v127 = vsel %vm121, %v126, 0.0
      %128 = vadd.xlane.f32.xlu0 %v127
      %v129 = vpop.xlane.xlu0 %128
      %v130 = vrot.slane %v129, 4
      %v131 = vadd.f32 %v129, %v130
      %v132 = vrot.slane %v131, 2
      %v133 = vadd.f32 %v131, %v132
      %v134 = vrot.slane %v133, 1
      %v135 = vadd.f32 %v133, %v134
      %s136 = vtos %v135
      %v137 = vstv %s136
      %v138 = vmul.f32 %v137, 0.125
      %vm139 = vcmask 0
      %140 = vst.msk [vmem:[#allocation6] sm:$0x1] %vm139, %v138
    $region25: #{tpu_custom_call.1} parent=1 // pred_fallthru
      _
    // Predicated region
    $region26: #{tpu_custom_call.1} parent=1 // pred_check
      _
    $region27: #{tpu_custom_call.1} parent=1 // pred_check_branch
      %142 = sbr.rel (0) target = $region29
    $region28: #{tpu_custom_call.1} parent=1 // pred_region
      %s144 = ssub.s32 16, 16
      %145 = vsyncadd [#allocation5], %s144
      %s147 = sshll.u32 [#allocation6], 4
      %s148 = int_to_ptr.vmem [resolvable:$true] %s147
      %150 = dma.vmem_to_hbm [thread:$0]  %s148, 16, %s3, [#allocation5]
    $region29: #{tpu_custom_call.1} parent=1 // pred_fallthru
      _
    // Predicated region
    $region30: #{tpu_custom_call.1} parent=1 // pred_check
      _
    $region31: #{tpu_custom_call.1} parent=1 // pred_check_branch
      %152 = sbr.rel (0) target = $region33
    $region32: #{tpu_custom_call.1} parent=1 // pred_region
      %153 = dma.done [#allocation5], 16
    $region33: #{tpu_custom_call.1} parent=1 // pred_fallthru
      _
    %154 = vsyncpa [#allocation4], 1
    %155 = vsyncpa [#allocation5], 1

</llo_original>
